<compile_context>
chip_gen: v7x
topology: tpu7x:2x2x1
jax: 0.10.0
libtpu: 0.0.40
codegen_flags: <defaults>
</compile_context>

<pallas_src>
import math
import functools

import jax
import jax.numpy as jnp
from jax import lax
from jax.experimental import pallas as pl
from jax.experimental.pallas import tpu as pltpu


def _pad_to(v, m):
    return pl.cdiv(v, m) * m


def _equal_conv2d_mm_kernel(w_ref, p_ref, b_ref, o_ref, acc_ref, *, scale):
    # w_ref:   (tO, tK)   bf16 raw (unscaled) weight tile
    # p_ref:   (tK, BL)   bf16 im2col patch tile (lane-dense, BL % 128 == 0)
    # b_ref:   (tO, 1)    f32 bias (broadcasts over lanes)
    # o_ref:   (tO, BL)   output tile
    # acc_ref: (tO, BL)   f32 accumulator scratch (lives across the k axis)
    k = pl.program_id(3)

    @pl.when(k == 0)
    def _():
        acc_ref[...] = jnp.zeros_like(acc_ref)

    acc_ref[...] += jnp.dot(w_ref[...], p_ref[...],
                            preferred_element_type=jnp.float32)

    @pl.when(k == pl.num_programs(3) - 1)
    def _():
        o_ref[...] = (acc_ref[...] * scale
                      + b_ref[...].astype(jnp.float32)).astype(o_ref.dtype)


def equal_conv2d(x, weight, bias=None, *, stride=1, padding=0,
                 compute_dtype=jnp.bfloat16):
    """Pallas implementation of EqualConv2d.forward (NCHW / OIHW).

    Matmul operands are cast to `compute_dtype` (bf16 by default, native MXU
    rate); accumulation is always f32; output keeps x.dtype.
    """
    N, C, H, W = x.shape
    O, Cw, K, Kw = weight.shape
    assert C == Cw and K == Kw
    scale = 1.0 / math.sqrt(C * K * K)
    out_dtype = x.dtype

    Hp, Wp = H + 2 * padding, W + 2 * padding
    OH = (Hp - K) // stride + 1
    OW = (Wp - K) // stride + 1
    KK = K * K
    CKK = C * KK

    # ---------------- wrapper-side im2col (pad / taps / stride via XLA) -----
    xp = jnp.pad(x, ((0, 0), (0, 0), (padding, padding), (padding, padding)))
    taps = []
    for kh in range(K):
        for kw in range(K):
            taps.append(
                lax.slice(
                    xp,
                    (0, 0, kh, kw),
                    (N, C, kh + (OH - 1) * stride + 1, kw + (OW - 1) * stride + 1),
                    (1, 1, stride, stride),
                ))                                    # (N, C, OH, OW)
    taps = jnp.stack(taps, axis=2)                    # (N, C, KK, OH, OW)

    use_fused_batch = (OH * OW < 128) and (N > 1)
    if use_fused_batch:
        # Tiny spatial: fold batch into the lane dim (costs two XLA transposes
        # but avoids heavy per-image lane padding).
        patches = taps.transpose(1, 2, 0, 3, 4).reshape(1, CKK, N * OH * OW)
        Nb, L = 1, N * OH * OW
    else:
        # Pure reshape — no HBM transpose; grid-over-N feeds megacore.
        patches = taps.reshape(N, CKK, OH * OW)
        Nb, L = N, OH * OW

    # ---------------- tile sizing & padding ---------------------------------
    # Contraction (C*K*K) tiling: resident when small, streamed in 512-chunks
    # when large.  O tiling likewise.
    if CKK <= 512:
        CKKp, tK = _pad_to(CKK, 16), _pad_to(CKK, 16)
    else:
        CKKp, tK = _pad_to(CKK, 512), 512
    if O <= 256:
        Opad, tO = _pad_to(O, 8), _pad_to(O, 8)
    else:
        Opad, tO = _pad_to(O, 256), 256

    Lp = _pad_to(L, 128)
    out_isz = jnp.dtype(out_dtype).itemsize
    cd_isz = jnp.dtype(compute_dtype).itemsize
    # Largest lane block (multiple of 128, divides Lp) whose double-buffered
    # patch/out tiles + f32 accumulator stay within a ~24 MiB budget.
    bytes_per_lane = 2 * tK * cd_isz + 2 * tO * out_isz + tO * 4
    bl_cap = max(128, min(2048, ((24 << 20) // bytes_per_lane) // 128 * 128))
    BL = min(Lp, bl_cap)
    while Lp % BL:
        BL -= 128

    # ---------------- operand prep (pad + bf16 cast) ------------------------
    patches = jnp.pad(patches, ((0, 0), (0, CKKp - CKK), (0, Lp - L)))
    patches = patches.astype(compute_dtype)

    w_flat = weight.reshape(O, CKK)
    w_flat = jnp.pad(w_flat, ((0, Opad - O), (0, CKKp - CKK))).astype(compute_dtype)

    b_vec = bias if bias is not None else jnp.zeros((O,), jnp.float32)
    b2 = jnp.pad(b_vec.astype(jnp.float32), (0, Opad - O)).reshape(Opad, 1)

    # ---------------- explicit VMEM budget (with headroom) ------------------
    vmem_bytes = (2 * tK * BL * cd_isz       # patch tile, double-buffered
                  + 2 * tO * tK * cd_isz     # weight tile, double-buffered
                  + 2 * tO * BL * out_isz    # output tile, double-buffered
                  + tO * BL * 4              # f32 accumulator scratch
                  + 2 * tO * 128 * 4)        # bias tile
    vmem_limit = int(min(max(4 * vmem_bytes, 32 << 20), 48 << 20))

    grid = (Nb, Opad // tO, Lp // BL, CKKp // tK)
    kernel = functools.partial(_equal_conv2d_mm_kernel, scale=scale)

    out = pl.pallas_call(
        kernel,
        out_shape=jax.ShapeDtypeStruct((Nb, Opad, Lp), out_dtype),
        grid=grid,
        in_specs=[
            pl.BlockSpec((tO, tK), lambda n, o, l, k: (o, k)),           # weight
            pl.BlockSpec((None, tK, BL), lambda n, o, l, k: (n, k, l)),  # patches
            pl.BlockSpec((tO, 1), lambda n, o, l, k: (o, 0)),            # bias
        ],
        out_specs=pl.BlockSpec((None, tO, BL), lambda n, o, l, k: (n, o, l)),
        scratch_shapes=[pltpu.VMEM((tO, BL), jnp.float32)],
        compiler_params=pltpu.CompilerParams(
            dimension_semantics=("parallel", "parallel", "parallel", "arbitrary"),
            vmem_limit_bytes=vmem_limit,
        ),
    )(w_flat, patches, b2)

    # ---------------- un-pad / un-flatten ------------------------------------
    out = out[:, :O, :L]
    if use_fused_batch:
        out = out.reshape(O, N, OH, OW).transpose(1, 0, 2, 3)
    else:
        out = out.reshape(N, O, OH, OW)
    return out


if __name__ == "__main__":
    # Module config: EqualConv2d(in_channel=4, out_channel=8, kernel_size=3,
    #                            stride=1, padding=1, bias=True)
    N, C_in, C_out, K = 2, 4, 8, 3
    H = W = 16
    stride, padding = 1, 1

    key = jax.random.PRNGKey(0)
    k_x, k_w = jax.random.split(key)
    x = jax.random.normal(k_x, (N, C_in, H, W), dtype=jnp.float32)
    # torch.randn-equivalent init for the weight; bias initialized to zeros.
    weight = jax.random.normal(k_w, (C_out, C_in, K, K), dtype=jnp.float32)
    bias = jnp.zeros((C_out,), dtype=jnp.float32)

    out = equal_conv2d(x, weight, bias, stride=stride, padding=padding)
    out = jax.block_until_ready(out)

    # Pure-JAX reference (F.conv2d semantics).  The kernel uses bf16 operands
    # with f32 accumulation, so the reference uses the same bf16-rounded
    # operands (high-precision conv) to keep the tolerance tight.
    scale = 1.0 / math.sqrt(C_in * K * K)
    x_bf = x.astype(jnp.bfloat16).astype(jnp.float32)
    w_bf = weight.astype(jnp.bfloat16).astype(jnp.float32)
    ref = lax.conv_general_dilated(
        x_bf, w_bf * scale,
        window_strides=(stride, stride),
        padding=[(padding, padding), (padding, padding)],
        dimension_numbers=("NCHW", "OIHW", "NCHW"),
        precision=lax.Precision.HIGHEST,
    ) + bias.reshape(1, C_out, 1, 1)

    assert out.shape == (N, C_out, H, W)
    err = float(jnp.max(jnp.abs(out - ref)))
    assert jnp.allclose(out, ref, atol=1e-3, rtol=1e-3), err
    print("KERNEL_OK")
</pallas_src>

<mosaic_0001>
module attributes {stable_mosaic.version = 11 : i64} {
  func.func @_equal_conv2d_mm_kernel(%arg0: i32, %arg1: i32, %arg2: i32, %arg3: i32, %arg4: memref<8x48xbf16, #tpu.memory_space<vmem>>, %arg5: memref<1x48x256xbf16, #tpu.memory_space<vmem>>, %arg6: memref<8x1xf32, #tpu.memory_space<vmem>>, %arg7: memref<1x8x256xf32, #tpu.memory_space<vmem>>, %arg8: memref<8x256xf32, #tpu.memory_space<vmem>>) attributes {dimension_semantics = [#tpu.dimension_semantics<parallel>, #tpu.dimension_semantics<parallel>, #tpu.dimension_semantics<parallel>, #tpu.dimension_semantics<arbitrary>], iteration_bounds = array<i64: 2, 1, 1, 1>, scalar_prefetch = 0 : i64, scratch_operands = 1 : i64, tpu.core_type = #tpu.core_type<tc>, window_params = [{transform_indices = @transform_0, window_bounds = array<i64: 8, 48>}, {transform_indices = @transform_1, window_bounds = array<i64: 1, 48, 256>}, {transform_indices = @transform_2, window_bounds = array<i64: 8, 1>}, {transform_indices = @transform_3, window_bounds = array<i64: 1, 8, 256>}]} {
    %c0_i32 = arith.constant 0 : i32
    %0 = arith.cmpi eq, %arg3, %c0_i32 : i32
    %1 = arith.extui %0 : i1 to i32
    %c0_i32_0 = arith.constant 0 : i32
    %2 = arith.cmpi ne, %1, %c0_i32_0 : i32
    scf.if %2 {
      %cst_11 = arith.constant 0.000000e+00 : f32
      %13 = vector.broadcast %cst_11 : f32 to vector<8x256xf32>
      %c0_12 = arith.constant 0 : index
      %c0_13 = arith.constant 0 : index
      %14 = vector.load %arg8[%c0_12, %c0_13] : memref<8x256xf32, #tpu.memory_space<vmem>>, vector<8x256xf32>
      tpu.vector_store %arg8[%c0_12, %c0_13], %13 {strides = array<i32>} : memref<8x256xf32, #tpu.memory_space<vmem>>, vector<8x256xf32>,
    } else {
    }
    %c0 = arith.constant 0 : index
    %c0_1 = arith.constant 0 : index
    %3 = vector.load %arg8[%c0, %c0_1] : memref<8x256xf32, #tpu.memory_space<vmem>>, vector<8x256xf32>
    %c0_2 = arith.constant 0 : index
    %c0_3 = arith.constant 0 : index
    %4 = vector.load %arg4[%c0_2, %c0_3] : memref<8x48xbf16, #tpu.memory_space<vmem>>, vector<8x48xbf16>
    %c0_4 = arith.constant 0 : index
    %c0_5 = arith.constant 0 : index
    %c0_6 = arith.constant 0 : index
    %5 = vector.load %arg5[%c0_4, %c0_5, %c0_6] : memref<1x48x256xbf16, #tpu.memory_space<vmem>>, vector<1x48x256xbf16>
    %6 = vector.shape_cast %5 : vector<1x48x256xbf16> to vector<48x256xbf16>
    %cst = arith.constant dense<0.000000e+00> : vector<8x256xf32>
    %7 = tpu.matmul %4, %6, %cst {dimension_numbers = #tpu.dot_dimension_numbers<[1], [0], [0], [1], [0, 0, 1, 1], [], []>} : vector<8x48xbf16>, vector<48x256xbf16>, vector<8x256xf32> -> vector<8x256xf32>
    %8 = arith.addf %3, %7 : vector<8x256xf32>
    %c0_7 = arith.constant 0 : index
    %c0_8 = arith.constant 0 : index
    %9 = vector.load %arg8[%c0_7, %c0_8] : memref<8x256xf32, #tpu.memory_space<vmem>>, vector<8x256xf32>
    tpu.vector_store %arg8[%c0_7, %c0_8], %8 {strides = array<i32>} : memref<8x256xf32, #tpu.memory_space<vmem>>, vector<8x256xf32>,
    %c0_i32_9 = arith.constant 0 : i32
    %10 = arith.cmpi eq, %arg3, %c0_i32_9 : i32
    %11 = arith.extui %10 : i1 to i32
    %c0_i32_10 = arith.constant 0 : i32
    %12 = arith.cmpi ne, %11, %c0_i32_10 : i32
    scf.if %12 {
      %c0_11 = arith.constant 0 : index
      %c0_12 = arith.constant 0 : index
      %13 = vector.load %arg8[%c0_11, %c0_12] : memref<8x256xf32, #tpu.memory_space<vmem>>, vector<8x256xf32>
      %cst_13 = arith.constant 0.166666672 : f32
      %14 = vector.broadcast %cst_13 : f32 to vector<8x256xf32>
      %15 = arith.mulf %13, %14 : vector<8x256xf32>
      %c0_14 = arith.constant 0 : index
      %c0_15 = arith.constant 0 : index
      %16 = vector.load %arg6[%c0_14, %c0_15] : memref<8x1xf32, #tpu.memory_space<vmem>>, vector<8x1xf32>
      %17 = vector.broadcast %16 : vector<8x1xf32> to vector<8x256xf32>
      %18 = arith.addf %15, %17 : vector<8x256xf32>
      %c0_16 = arith.constant 0 : index
      %c0_17 = arith.constant 0 : index
      %c0_18 = arith.constant 0 : index
      %19 = vector.load %arg7[%c0_16, %c0_17, %c0_18] : memref<1x8x256xf32, #tpu.memory_space<vmem>>, vector<1x8x256xf32>
      %20 = vector.shape_cast %19 : vector<1x8x256xf32> to vector<8x256xf32>
      %21 = vector.shape_cast %18 : vector<8x256xf32> to vector<1x8x256xf32>
      tpu.vector_store %arg7[%c0_16, %c0_17, %c0_18], %21 {strides = array<i32>} : memref<1x8x256xf32, #tpu.memory_space<vmem>>, vector<1x8x256xf32>,
    } else {
    }
    return
  }
  func.func @transform_0(%arg0: i32, %arg1: i32, %arg2: i32, %arg3: i32) -> (i32, i32) {
    %c0_i32 = arith.constant 0 : i32
    return %arg1, %arg3 : i32, i32
  }
  func.func @transform_1(%arg0: i32, %arg1: i32, %arg2: i32, %arg3: i32) -> (i32, i32, i32) {
    %c0_i32 = arith.constant 0 : i32
    return %arg0, %arg3, %arg2 : i32, i32, i32
  }
  func.func @transform_2(%arg0: i32, %arg1: i32, %arg2: i32, %arg3: i32) -> (i32, i32) {
    %c0_i32 = arith.constant 0 : i32
    %c0_i32_0 = arith.constant 0 : i32
    return %arg1, %c0_i32 : i32, i32
  }
  func.func @transform_3(%arg0: i32, %arg1: i32, %arg2: i32, %arg3: i32) -> (i32, i32, i32) {
    %c0_i32 = arith.constant 0 : i32
    return %arg0, %arg1, %arg2 : i32, i32, i32
  }
}

</mosaic_0001>

<llo_original>
// kernel: tpu_custom_call.1
$region0: #{tpu_custom_call.1}
  #allocation0 [shape = 'u32[]', space=smem, size = 0x4, offset = 0x4, fixed_abs, tag = 'smem constant byte address 0x4 - core index']
  #allocation1 [shape = 'u32[144,128]{1,0:T(1,128)}', space=vmem, size = 0x12000, scoped, tag = 'internal scratch']
  #allocation2 [shape = 'f32[8,256]{1,0:T(8,128)}', space=vmem, size = 0x2000, scoped, tag = 'scratch operand']
  %s0 = inlined_call_operand.vmem [shape: bf16[8,48], index: 0, kind: input, shape index: {}]
  %s1 = inlined_call_operand.hbm [shape: bf16[2,48,256], index: 1, kind: input, shape index: {}]
  %s2 = inlined_call_operand.vmem [shape: f32[8,1], index: 2, kind: input, shape index: {}]
  %s3 = inlined_call_operand.hbm [shape: f32[2,8,256], index: 3, kind: output, shape index: {}]
  %s4 = sld [smem:[#allocation0]]
  $region57: #{tpu_custom_call.1} parent=0
    _
  %s6 = ssub.s32 1, %s4
  %s7 = scalar_select 0, %s6, %s4
  $region1: #{tpu_custom_call.1} parent=0
    #allocation3 [shape = 'u8[49152]{0}', space=vmem, size = 0xc000, scoped, tag = 'input window, operand 1']
    #allocation4 [shape = 's32[2]{0}', space=sflag, size = 0x8, scoped, tag = 'scoped memory for tpu_custom_call.1']
    #allocation5 [shape = 's32[2]{0}', space=sflag, size = 0x8, scoped, tag = 'scoped memory for tpu_custom_call.1']
    #allocation6 [shape = 'u8[16384]{0}', space=vmem, size = 0x4000, scoped, tag = 'output window, operand 0']
    %8 = vsyncpa [#allocation4], 0
    %s9 = scalar_lea.sflag [#allocation4], 1
    %10 = vsyncpa %s9, 0
    %11 = vsyncpa [#allocation5], 0
    %s12 = scalar_lea.sflag [#allocation5], 1
    %13 = vsyncpa %s12, 0
    loop: start=0, step=1, limit=4
    $region2: #{tpu_custom_call.1} parent=1 // loop_pre_header
      _
    $region3: #{tpu_custom_call.1} parent=1 // loop_header
      %s15 = sphi 0, %s19
      %p16 = scmp.ge.s32.totalorder %s15, 4
      %s22 = sphi 0, %s48
      %s23 = sphi 0, %s44
      %s24 = sphi 0, %s40
      %s25 = sphi 0, %s36
      %s26 = sphi 0, %s22
      %s27 = sphi 0, %s23
      %s28 = sphi 0, %s24
      %s29 = sphi 0, %s25
      %s30 = sphi 0, %s26
      %s31 = sphi 0, %s27
      %s32 = sphi 0, %s28
      %s33 = sphi 0, %s29
      %s53 = sphi 0, %s55
      %s56 = sphi 0, %s53
      %s57 = sphi 0, %s56
      %s73 = sphi 0, %s57
      %s83 = sphi 0, %s85
      %s86 = sphi 0, %s83
      %s87 = sphi 0, %s86
      %s103 = sphi 0, %s87
      %s109 = sphi 0, %s111
      %s112 = sphi 0, %s109
      %s113 = sphi 0, %s112
      %s129 = sphi 0, %s113
      %s139 = sphi 0, %s141
      %s142 = sphi 0, %s139
      %s143 = sphi 0, %s142
      %s159 = sphi 0, %s143
    $region4: #{tpu_custom_call.1} parent=1 // loop_header_branch
      %18 = sbr.rel (%p16) target = $region8
    $region5: #{tpu_custom_call.1} parent=1 // loop_body
      %s20 = ssub.s32 %s15, 1
      %s21 = ssub.s32 %s15, 2
      %s34 = sadd.s32 1, %s25
      %p35 = scmp.ge.s32.totalorder %s34, 1
      %s36 = scalar_select %p35, 0, %s34
      %s37 = sadd.s32 1, %s24
      %s38 = scalar_select %p35, %s37, %s24
      %p39 = scmp.ge.s32.totalorder %s38, 1
      %s40 = scalar_select %p39, 0, %s38
      %s41 = sadd.s32 1, %s23
      %s42 = scalar_select %p39, %s41, %s23
      %p43 = scmp.ge.s32.totalorder %s42, 1
      %s44 = scalar_select %p43, 0, %s42
      %s45 = sadd.s32 1, %s22
      %s46 = scalar_select %p43, %s45, %s22
      %p47 = scmp.ge.s32.totalorder %s46, 2
      %s48 = scalar_select %p47, 0, %s46
      %s49 = ssub.s32 %s23, %s44
      %s50 = ssub.s32 %s25, %s36
      %s51 = sor.u32 %s49, %s50
      %p52 = scmp.eq.s32.totalorder %s51, 0
      %s54 = sadd.s32 %s53, 1
      %s55 = scalar_select %p52, %s53, %s54
      %p58 = pneg %p52
      %p59 = scmp.eq.s32.totalorder %s15, 1
      %p60 = por %p58, %p59
      %p61 = scmp.ne.s32.totalorder %s53, %s56
      %p62 = scmp.eq.s32.totalorder %s15, 0
      %p63 = por %p61, %p62
      %p64 = scmp.ne.s32.totalorder %s53, %s56
      %p65 = scmp.eq.s32.totalorder %s20, 1
      %p66 = por %p64, %p65
      %p67 = scmp.ne.s32.totalorder %s56, %s57
      %p68 = scmp.eq.s32.totalorder %s20, 0
      %p69 = por %p67, %p68
      %p70 = scmp.ne.s32.totalorder %s56, %s57
      %p71 = scmp.eq.s32.totalorder %s21, 1
      %p72 = por %p70, %p71
      %p74 = scmp.ne.s32.totalorder %s57, %s73
      %p75 = scmp.eq.s32.totalorder %s21, 0
      %p76 = por %p74, %p75
      %s77 = ssub.s32 %s22, %s48
      %s78 = ssub.s32 %s25, %s36
      %s79 = sor.u32 %s77, %s78
      %s80 = ssub.s32 %s24, %s40
      %s81 = sor.u32 %s79, %s80
      %p82 = scmp.eq.s32.totalorder %s81, 0
      %s84 = sadd.s32 %s83, 1
      %s85 = scalar_select %p82, %s83, %s84
      %p88 = pneg %p82
      %p89 = scmp.eq.s32.totalorder %s15, 1
      %p90 = por %p88, %p89
      %p91 = scmp.ne.s32.totalorder %s83, %s86
      %p92 = scmp.eq.s32.totalorder %s15, 0
      %p93 = por %p91, %p92
      %p94 = scmp.ne.s32.totalorder %s83, %s86
      %p95 = scmp.eq.s32.totalorder %s20, 1
      %p96 = por %p94, %p95
      %p97 = scmp.ne.s32.totalorder %s86, %s87
      %p98 = scmp.eq.s32.totalorder %s20, 0
      %p99 = por %p97, %p98
      %p100 = scmp.ne.s32.totalorder %s86, %s87
      %p101 = scmp.eq.s32.totalorder %s21, 1
      %p102 = por %p100, %p101
      %p104 = scmp.ne.s32.totalorder %s87, %s103
      %p105 = scmp.eq.s32.totalorder %s21, 0
      %p106 = por %p104, %p105
      %s107 = ssub.s32 %s23, %s44
      %p108 = scmp.eq.s32.totalorder %s107, 0
      %s110 = sadd.s32 %s109, 1
      %s111 = scalar_select %p108, %s109, %s110
      %p114 = pneg %p108
      %p115 = scmp.eq.s32.totalorder %s15, 1
      %p116 = por %p114, %p115
      %p117 = scmp.ne.s32.totalorder %s109, %s112
      %p118 = scmp.eq.s32.totalorder %s15, 0
      %p119 = por %p117, %p118
      %p120 = scmp.ne.s32.totalorder %s109, %s112
      %p121 = scmp.eq.s32.totalorder %s20, 1
      %p122 = por %p120, %p121
      %p123 = scmp.ne.s32.totalorder %s112, %s113
      %p124 = scmp.eq.s32.totalorder %s20, 0
      %p125 = por %p123, %p124
      %p126 = scmp.ne.s32.totalorder %s112, %s113
      %p127 = scmp.eq.s32.totalorder %s21, 1
      %p128 = por %p126, %p127
      %p130 = scmp.ne.s32.totalorder %s113, %s129
      %p131 = scmp.eq.s32.totalorder %s21, 0
      %p132 = por %p130, %p131
      %s133 = ssub.s32 %s22, %s48
      %s134 = ssub.s32 %s23, %s44
      %s135 = sor.u32 %s133, %s134
      %s136 = ssub.s32 %s24, %s40
      %s137 = sor.u32 %s135, %s136
      %p138 = scmp.eq.s32.totalorder %s137, 0
      %s140 = sadd.s32 %s139, 1
      %s141 = scalar_select %p138, %s139, %s140
      %p144 = pneg %p138
      %p145 = scmp.eq.s32.totalorder %s15, 1
      %p146 = por %p144, %p145
      %p147 = scmp.ne.s32.totalorder %s139, %s142
      %p148 = scmp.eq.s32.totalorder %s15, 0
      %p149 = por %p147, %p148
      %p150 = scmp.ne.s32.totalorder %s139, %s142
      %p151 = scmp.eq.s32.totalorder %s20, 1
      %p152 = por %p150, %p151
      %p153 = scmp.ne.s32.totalorder %s142, %s143
      %p154 = scmp.eq.s32.totalorder %s20, 0
      %p155 = por %p153, %p154
      %p156 = scmp.ne.s32.totalorder %s142, %s143
      %p157 = scmp.eq.s32.totalorder %s21, 1
      %p158 = por %p156, %p157
      %p160 = scmp.ne.s32.totalorder %s143, %s159
      %p161 = scmp.eq.s32.totalorder %s21, 0
      %p162 = por %p160, %p161
      %p163 = scmp.le.s32.totalorder 1, %s15
      %p164 = scmp.lt.s32.totalorder %s15, 3
      %p165 = pnand %p163, %p164
      %p166 = pneg %p165
      // Predicated region
      $region9: #{tpu_custom_call.1} parent=5 // pred_check
        _
      $region10: #{tpu_custom_call.1} parent=5 // pred_check_branch
        %168 = sbr.rel (%p165) target = $region12
      $region11: #{tpu_custom_call.1} parent=5 // pred_region
        %s169 = ssub.s32 %s15, 1
        // Predicated region
        $region13: #{tpu_custom_call.1} parent=11 // pred_check
          %p170 = pneg %p69
        $region14: #{tpu_custom_call.1} parent=11 // pred_check_branch
          %172 = sbr.rel (%p170) target = $region16
        $region15: #{tpu_custom_call.1} parent=11 // pred_region
          %p173 = scmp.lt.s32.totalorder %s27, 0
          %s174 = scalar_select %p173, %s27, 0
          %p175 = scmp.lt.s32.totalorder %s29, 0
          %s176 = scalar_select %p175, %s29, 0
          %s177 = sadd.s32 %s176, %s174
          %s178 = smul.addr %s177, 4
          %s179 = scalar_lea.vmem %s0, %s178
        $region16: #{tpu_custom_call.1} parent=11 // pred_fallthru
          _
        // Predicated region
        $region17: #{tpu_custom_call.1} parent=11 // pred_check
          %p180 = pneg %p125
        $region18: #{tpu_custom_call.1} parent=11 // pred_check_branch
          %182 = sbr.rel (%p180) target = $region20
        $region19: #{tpu_custom_call.1} parent=11 // pred_region
          %p183 = scmp.lt.s32.totalorder %s27, 0
          %s184 = scalar_select %p183, %s27, 0
          %s185 = smul.addr %s184, 8
          %s186 = scalar_lea.vmem %s2, %s185
        $region20: #{tpu_custom_call.1} parent=11 // pred_fallthru
          _
      $region12: #{tpu_custom_call.1} parent=5 // pred_fallthru
        _
      %p187 = scmp.lt.s32.totalorder %s15, 2
      // Predicated region
      $region21: #{tpu_custom_call.1} parent=5 // pred_check
        %p188 = pneg %p187
      $region22: #{tpu_custom_call.1} parent=5 // pred_check_branch
        %190 = sbr.rel (%p188) target = $region24
      $region23: #{tpu_custom_call.1} parent=5 // pred_region
        // Predicated region
        $region25: #{tpu_custom_call.1} parent=23 // pred_check
          %p191 = pneg %p93
        $region26: #{tpu_custom_call.1} parent=23 // pred_check_branch
          %193 = sbr.rel (%p191) target = $region28
        $region27: #{tpu_custom_call.1} parent=23 // pred_region
          %s194 = sand.u32 %s83, 1
          %s195 = scalar_lea.sflag [#allocation4], %s194
          %s196 = sand.u32 %s83, 1
          %s197 = smul.addr %s196, 48
          %s198 = scalar_lea.vmem [#allocation3], %s197
          %s199 = smul.u32 6, %s25
          %s200 = smul.u32 2, %s24
          %s202 = ssub.s32 768, 768
          %203 = vsyncadd %s195, %s202
          %s204 = smul.addr %s199, 2
          %s205 = sadd.s32 %s200, %s204
          %s206 = smul.addr %s22, 12
          %s207 = sadd.s32 %s205, %s206
          %s208 = smul.addr %s207, 64
          %s209 = scalar_lea.hbm %s1, %s208
          %s210 = sshll.u32 %s198, 4
          %s211 = int_to_ptr.vmem [resolvable:$true] %s210
          %216 = dma.hbm_to_vmem [thread:$0]  %s209, 768, %s211, %s195, 128, 128, 8
        $region28: #{tpu_custom_call.1} parent=23 // pred_fallthru
          _
      $region24: #{tpu_custom_call.1} parent=5 // pred_fallthru
        _
      %p217 = scmp.le.s32.totalorder 1, %s15
      %p218 = scmp.lt.s32.totalorder %s15, 3
      %p219 = pnand %p217, %p218
      %p220 = pneg %p219
      // Predicated region
      $region29: #{tpu_custom_call.1} parent=5 // pred_check
        _
      $region30: #{tpu_custom_call.1} parent=5 // pred_check_branch
        %222 = sbr.rel (%p219) target = $region32
      $region31: #{tpu_custom_call.1} parent=5 // pred_region
        %s223 = ssub.s32 %s15, 1
        %s224 = sand.u32 %s86, 1
        %s225 = scalar_lea.sflag [#allocation4], %s224
        %s226 = sand.u32 %s86, 1
        %s227 = smul.addr %s226, 48
        %s228 = scalar_lea.vmem [#allocation3], %s227
        // Predicated region
        $region33: #{tpu_custom_call.1} parent=31 // pred_check
          %p229 = pneg %p99
        $region34: #{tpu_custom_call.1} parent=31 // pred_check_branch
          %231 = sbr.rel (%p229) target = $region36
        $region35: #{tpu_custom_call.1} parent=31 // pred_region
          %232 = dma.done %s225, 768
        $region36: #{tpu_custom_call.1} parent=31 // pred_fallthru
          _
        %p233 = scmp.lt.s32.totalorder %s27, 0
        %s234 = scalar_select %p233, %s27, 0
        %p235 = scmp.lt.s32.totalorder %s29, 0
        %s236 = scalar_select %p235, %s29, 0
        %s237 = sadd.s32 %s236, %s234
        %s238 = smul.addr %s237, 4
        %s239 = scalar_lea.vmem %s0, %s238
        %p240 = pneg %p69
        %p241 = pneg %p66
        %s242 = sand.u32 %s86, 1
        %s243 = scalar_lea.sflag [#allocation4], %s242
        %s244 = sand.u32 %s86, 1
        %s245 = smul.addr %s244, 48
        %s246 = scalar_lea.vmem [#allocation3], %s245
        %p247 = pneg %p99
        %p248 = pneg %p96
        %p249 = scmp.lt.s32.totalorder %s27, 0
        %s250 = scalar_select %p249, %s27, 0
        %s251 = smul.addr %s250, 8
        %s252 = scalar_lea.vmem %s2, %s251
        %p253 = pneg %p125
        %p254 = pneg %p122
        %p255 = pneg %p155
        %p256 = pneg %p152
        %s257 = sand.u32 %s142, 1
        %s258 = scalar_lea.sflag [#allocation5], %s257
        %s259 = sand.u32 %s142, 1
        %s260 = smul.addr %s259, 16
        %s261 = scalar_lea.vmem [#allocation6], %s260
        %p262 = scmp.lt.s32.totalorder %s27, 0
        %s263 = scalar_select %p262, %s27, 0
        %p264 = scmp.lt.s32.totalorder %s29, 0
        %s265 = scalar_select %p264, %s29, 0
        %s266 = sadd.s32 %s265, %s263
        %s267 = smul.addr %s266, 4
        %s268 = scalar_lea.vmem %s0, %s267
        %s269 = smul.u32 6, %s29
        %s270 = smul.u32 2, %s28
        %p271 = scmp.lt.s32.totalorder %s27, 0
        %s272 = scalar_select %p271, %s27, 0
        %s273 = smul.addr %s272, 8
        %s274 = scalar_lea.vmem %s2, %s273
        %s275 = smul.u32 2, %s28
        %p277 = scmp.eq.s32.totalorder %s29, 0
        // Predicated region
        $region37: #{tpu_custom_call.1} parent=31 // pred_check
          %p278 = pneg %p277
        $region38: #{tpu_custom_call.1} parent=31 // pred_check_branch
          %280 = sbr.rel (%p278) target = $region40
        $region39: #{tpu_custom_call.1} parent=31 // pred_region
          %281 = vst [vmem:[#allocation2] sm:$0xff] 0.0
          %282 = vst [vmem:[#allocation2 + $0x8] sm:$0xff] 0.0
        $region40: #{tpu_custom_call.1} parent=31 // pred_fallthru
          _
        %v283 = vld [vmem:[#allocation2] sm:$0xff]
        %v284 = vld [vmem:[#allocation2 + $0x8] sm:$0xff]
        %v285 = vld [vmem:[%s268] sm:$0xf]
        %v286 = vld [vmem:[%s228] sm:$0xff]
        %v287 = vld [vmem:[%s228 + $0x8] sm:$0xff]
        %v288 = vld [vmem:[%s228 + $0x10] sm:$0xff]
        %v289 = vld [vmem:[%s228 + $0x18] sm:$0xff]
        %v290 = vld [vmem:[%s228 + $0x20] sm:$0xff]
        %v291 = vld [vmem:[%s228 + $0x28] sm:$0xff]
        %v298 = vunpack.c.l.b16 %v286
        %v299 = vunpack.c.h.b16 %v286
        %v300 = vunpack.c.l.b16 %v287
        %v301 = vunpack.c.h.b16 %v287
        %v302 = vunpack.c.l.b16 %v288
        %v303 = vunpack.c.h.b16 %v288
        %v304 = vunpack.c.l.b16 %v289
        %v305 = vunpack.c.h.b16 %v289
        %v306 = vunpack.c.l.b16 %v290
        %v307 = vunpack.c.h.b16 %v290
        %v308 = vunpack.c.l.b16 %v291
        %v309 = vunpack.c.h.b16 %v291
        %v310 = vpack.c.b16 %v300, %v298
        %v311 = vpack.c.b16 %v301, %v299
        %v312 = vpack.c.b16 %v304, %v302
        %v313 = vpack.c.b16 %v305, %v303
        %v314 = vpack.c.b16 %v308, %v306
        %v315 = vpack.c.b16 %v309, %v307
        %vm322 = vcmask 392192
        %v324 = vsel %vm322, %v285, 0
        %326 = vmatprep.subr.bf16.mxu0 %v311
        %327 = vmatpush1.bf16.msra.mxu0 %v310
        %328 = vmatprep.subr.bf16.mxu0 %v313
        %329 = vmatpush1.bf16.msra.mxu0 %v312
        %330 = vmatprep.subr.bf16.mxu0 %v315
        %331 = vmatpush1.bf16.msra.mxu0 %v314
        %332 = vmatprep.subr.bf16.mxu0 0
        %333 = vmatpush1.bf16.msra.mxu0 0
        %334 = vmatprep.subr.bf16.mxu0 0
        %335 = vmatpush1.bf16.msra.mxu0 0
        %336 = vmatprep.subr.bf16.mxu0 0
        %337 = vmatpush1.bf16.msra.mxu0 0
        %338 = vmatprep.subr.bf16.mxu0 0
        %339 = vmatpush1.bf16.msra.mxu0 0
        %340 = vmatprep.subr.bf16.mxu0 0
        %341 = vmatpush1.bf16.msra.mxu0 0
        %342 = vmatprep.subr.bf16.mxu0 0
        %343 = vmatpush1.bf16.msra.mxu0 0
        %344 = vmatprep.subr.bf16.mxu0 0
        %345 = vmatpush1.bf16.msra.mxu0 0
        %346 = vmatprep.subr.bf16.mxu0 0
        %347 = vmatpush1.bf16.msra.mxu0 0
        %348 = vmatprep.subr.bf16.mxu0 0
        %349 = vmatpush1.bf16.msra.mxu0 0
        %350 = vmatprep.subr.bf16.mxu0 0
        %351 = vmatpush1.bf16.msra.mxu0 0
        %352 = vmatprep.subr.bf16.mxu0 0
        %353 = vmatpush1.bf16.msra.mxu0 0
        %354 = vmatprep.subr.bf16.mxu0 0
        %355 = vmatpush1.bf16.msra.mxu0 0
        %356 = vmatprep.subr.bf16.mxu0 0
        %357 = vmatpush1.bf16.msra.mxu0 0
        %358 = vmatprep.mubr.bf16.mxu0 0
        %359 = vmatmul.mubr.bf16.gmra.mrb[0].mxu0 %v324
        %v360 = vpop.f32.mrb[0].mxu0
        %v361 = vadd.f32 0.0, %v360
        %v362 = vpop.f32.mrb[0].mxu0
        %v363 = vadd.f32 0.0, %v362
        %v364 = vpop.f32.mrb[0].mxu0
        %v365 = vpop.f32.mrb[0].mxu0
        %366 = vdwg.mxu0
        %v367 = vadd.f32 %v283, %v361
        %v368 = vadd.f32 %v284, %v363
        %369 = vst [vmem:[#allocation2] sm:$0xff] %v367
        %370 = vst [vmem:[#allocation2 + $0x8] sm:$0xff] %v368
        // Predicated region
        $region41: #{tpu_custom_call.1} parent=31 // pred_check
          %p371 = pneg %p277
        $region42: #{tpu_custom_call.1} parent=31 // pred_check_branch
          %373 = sbr.rel (%p371) target = $region44
        $region43: #{tpu_custom_call.1} parent=31 // pred_region
          %v374 = vld [vmem:[#allocation2] sm:$0xff]
          %v375 = vld [vmem:[#allocation2 + $0x8] sm:$0xff]
          %v376 = vmul.f32 %v374, 0.16666667
          %v377 = vmul.f32 %v375, 0.16666667
          %v378 = vld [vmem:[%s274] sm:$0xff]
          %380 = vset.pattern.permute.xlu0 0
          %381 = vperm.xlu0 %380, %v378
          %v382 = vpop.permute.xlu0 %381
          %v384 = vadd.f32 %v376, %v382
          %v385 = vadd.f32 %v377, %v382
          %386 = vst [vmem:[%s261] sm:$0xff] %v384
          %387 = vst [vmem:[%s261 + $0x8] sm:$0xff] %v385
        $region44: #{tpu_custom_call.1} parent=31 // pred_fallthru
          _
        %s388 = sand.u32 %s142, 1
        %s389 = scalar_lea.sflag [#allocation5], %s388
        %s390 = sand.u32 %s142, 1
        %s391 = smul.addr %s390, 16
        %s392 = scalar_lea.vmem [#allocation6], %s391
        // Predicated region
        $region45: #{tpu_custom_call.1} parent=31 // pred_check
          %p393 = pneg %p152
        $region46: #{tpu_custom_call.1} parent=31 // pred_check_branch
          %395 = sbr.rel (%p393) target = $region48
        $region47: #{tpu_custom_call.1} parent=31 // pred_region
          %s396 = smul.u32 2, %s28
          %s398 = ssub.s32 256, 256
          %399 = vsyncadd %s389, %s398
          %s400 = smul.addr %s27, 2
          %s401 = sadd.s32 %s396, %s400
          %s402 = smul.addr %s26, 2
          %s403 = sadd.s32 %s401, %s402
          %s404 = smul.addr %s403, 128
          %s405 = scalar_lea.hbm %s3, %s404
          %s407 = sshll.u32 %s392, 4
          %s408 = int_to_ptr.vmem [resolvable:$true] %s407
          %410 = dma.vmem_to_hbm [thread:$0]  %s408, 256, %s405, %s389
        $region48: #{tpu_custom_call.1} parent=31 // pred_fallthru
          _
      $region32: #{tpu_custom_call.1} parent=5 // pred_fallthru
        _
      %p411 = scmp.le.s32.totalorder 2, %s15
      // Predicated region
      $region49: #{tpu_custom_call.1} parent=5 // pred_check
        %p412 = pneg %p411
      $region50: #{tpu_custom_call.1} parent=5 // pred_check_branch
        %414 = sbr.rel (%p412) target = $region52
      $region51: #{tpu_custom_call.1} parent=5 // pred_region
        %s415 = ssub.s32 %s15, 2
        // Predicated region
        $region53: #{tpu_custom_call.1} parent=51 // pred_check
          %p416 = pneg %p158
        $region54: #{tpu_custom_call.1} parent=51 // pred_check_branch
          %418 = sbr.rel (%p416) target = $region56
        $region55: #{tpu_custom_call.1} parent=51 // pred_region
          %s419 = sand.u32 %s143, 1
          %s420 = scalar_lea.sflag [#allocation5], %s419
          %s421 = sand.u32 %s143, 1
          %s422 = smul.addr %s421, 16
          %s423 = scalar_lea.vmem [#allocation6], %s422
          %424 = dma.done %s420, 256
        $region56: #{tpu_custom_call.1} parent=51 // pred_fallthru
          _
      $region52: #{tpu_custom_call.1} parent=5 // pred_fallthru
        _
    $region6: #{tpu_custom_call.1} parent=1 // loop_footer
      %s19 = sadd.s32 1, %s15
    $region7: #{tpu_custom_call.1} parent=1 // loop_footer_branch
      %14 = sbr.rel target = $region3
    $region8: #{tpu_custom_call.1} parent=1 // loop_exit
      _
    %425 = vsyncpa [#allocation4], 1
    %s426 = scalar_lea.sflag [#allocation4], 1
    %427 = vsyncpa %s426, 1
    %428 = vsyncpa [#allocation5], 1
    %s429 = scalar_lea.sflag [#allocation5], 1
    %430 = vsyncpa %s429, 1

</llo_original>
